<compile_context>
chip_gen: v7x
topology: tpu7x:2x2x1
jax: 0.10.0
libtpu: 0.0.40
codegen_flags: <defaults>
</compile_context>

<pallas_src>
import numpy as np
import jax
import jax.numpy as jnp
from jax.experimental import pallas as pl
from jax.experimental.pallas import tpu as pltpu


def _round_up(x, m):
    return ((x + m - 1) // m) * m


def lr_kernel(xT_ref, w_ref, start_ref, end_ref, bias_ref, out_ref):
    # xT_ref   : [F, TB]  int32  global (offset-added) indices, batch on lanes
    # w_ref    : [TV, 1]  f32    vocab tile of the embedding table (column)
    # start_ref: [F]      int32  per-field global vocab range start (SMEM)
    # end_ref  : [F]      int32  per-field global vocab range end   (SMEM)
    # bias_ref : [1]      f32    (SMEM)
    # out_ref  : [1, TB]  f32    accumulator + final sigmoid output (resident
    #                            across the vocab grid axis)
    k = pl.program_id(1)
    nk = pl.num_programs(1)

    F = xT_ref.shape[0]
    TB = xT_ref.shape[1]
    TV = w_ref.shape[0]

    @pl.when(k == 0)
    def _():
        out_ref[...] = jnp.zeros_like(out_ref)

    tile_lo = k * TV
    tile_hi = tile_lo + TV

    # Hoisted out of the per-field loop (JAX does not CSE broadcast_in_dim):
    # tile-local vocab ids on sublanes, and the weight column broadcast along
    # the (batch) lane axis.
    local_ids = jax.lax.broadcasted_iota(jnp.int32, (TV, TB), 0)   # [TV, TB]
    w_b = jnp.broadcast_to(w_ref[...], (TV, TB))                   # [TV, TB]

    # Static, tiny field loop (recsys field counts are O(10)) -> unrolled.
    # A field only runs if its vocab range intersects this vocab tile.
    for f in range(F):
        @pl.when(jnp.logical_and(start_ref[f] < tile_hi, end_ref[f] > tile_lo))
        def _(f=f):
            # Shift indices into tile-local id space: a [1, TB] subtract
            # instead of adding k*TV to the whole [TV, TB] iota.
            idx_local = xT_ref[f:f + 1, :] - tile_lo               # [1, TB]
            sel = jnp.where(idx_local == local_ids, w_b, 0.0)      # [TV, TB]
            out_ref[...] += jnp.sum(sel, axis=0, keepdims=True)    # [1, TB]

    @pl.when(k == nk - 1)
    def _():
        out_ref[...] = jax.nn.sigmoid(out_ref[...] + bias_ref[0])


def lr_forward(x_idx, offsets, weight, bias, *, tb=1024, tv=512):
    """x_idx: [B, F] int; offsets: [F] int; weight: [V] f32; bias scalar -> [B] f32.

    offsets must be [0, cumsum(field_dims)[:-1]] and V == sum(field_dims), as
    in the PyTorch module (field ends are derived as offsets[1:] ++ [V]).
    """
    B, F = x_idx.shape
    V = weight.shape[0]

    # Lane-aligned tiles (multiples of 128), capped at tb/tv.  For large B the
    # tb=1024 cap keeps >=2 batch tiles, preserving megacore sharding on v7x.
    TB = min(tb, _round_up(B, 128))
    TV = min(tv, _round_up(V, 128))
    B_pad = _round_up(B, TB)
    V_pad = _round_up(V, TV)

    offsets = jnp.asarray(offsets, jnp.int32).reshape(F)
    ends = jnp.concatenate([offsets[1:], jnp.array([V], jnp.int32)])

    # Fold offsets into the indices here (hoisted out of the kernel's vocab
    # loop), transpose so batch sits on the lane axis, pad with -1 so padded
    # lanes never match any vocab id.
    x_glob = (x_idx.astype(jnp.int32) + offsets[None, :]).T          # [F, B]
    xT = jnp.full((F, B_pad), -1, jnp.int32).at[:, :B].set(x_glob)

    # Weight table as a [V_pad, 1] column (vocab on sublanes), zero-padded.
    w_col = jnp.zeros((V_pad, 1), jnp.float32).at[:V, 0].set(
        weight.astype(jnp.float32))
    b1 = jnp.asarray(bias, jnp.float32).reshape(1)

    grid = (B_pad // TB, V_pad // TV)

    out = pl.pallas_call(
        lr_kernel,
        out_shape=jax.ShapeDtypeStruct((1, B_pad), jnp.float32),
        grid_spec=pltpu.PrefetchScalarGridSpec(
            num_scalar_prefetch=0,
            grid=grid,
            in_specs=[
                pl.BlockSpec((F, TB), lambda i, k: (0, i)),          # indices
                pl.BlockSpec((TV, 1), lambda i, k: (k, 0)),          # weights
                pl.BlockSpec(memory_space=pltpu.MemorySpace.SMEM),   # starts
                pl.BlockSpec(memory_space=pltpu.MemorySpace.SMEM),   # ends
                pl.BlockSpec(memory_space=pltpu.MemorySpace.SMEM),   # bias
            ],
            out_specs=pl.BlockSpec((1, TB), lambda i, k: (0, i)),
        ),
        compiler_params=pltpu.CompilerParams(
            dimension_semantics=("parallel", "arbitrary"),
            vmem_limit_bytes=32 * 1024 * 1024,
        ),
    )(xT, w_col, offsets, ends, b1)

    return out[0, :B]                                                # [B]


if __name__ == "__main__":
    # Small synthetic config consistent with the module.
    field_dims = [3, 5, 7, 9]          # dim_in = 24
    dim_in = int(sum(field_dims))
    field_num = len(field_dims)
    batch = 8

    # fea_idx_offsets = [0, cumsum(field_dims)[:-1]...]
    offsets_np = np.array([0, *np.cumsum(field_dims)[:-1]], dtype=np.int32)

    key = jax.random.PRNGKey(0)
    k_w, k_x = jax.random.split(key)
    # Deterministic parameter init (Embedding weight ~ N(0,1), bias = 0).
    weight = jax.random.normal(k_w, (dim_in,), dtype=jnp.float32)
    bias = jnp.zeros((1,), dtype=jnp.float32)

    # Each field index is in [0, field_dims[f]).
    x_cols = []
    for fd in field_dims:
        k_x, sub = jax.random.split(k_x)
        x_cols.append(jax.random.randint(sub, (batch, 1), 0, fd, dtype=jnp.int32))
    x = jnp.concatenate(x_cols, axis=1)               # [batch, field_num]

    out = lr_forward(x, jnp.asarray(offsets_np), weight, bias)
    jax.block_until_ready(out)

    # Pure-JAX reference check of the forward semantics.
    idx_ref = x + offsets_np[None, :]
    ref = jax.nn.sigmoid(jnp.sum(weight[idx_ref], axis=1) + bias[0])
    np.testing.assert_allclose(np.asarray(out), np.asarray(ref), rtol=1e-5, atol=1e-6)

    print("KERNEL_OK")
</pallas_src>

<mosaic_0001>
module attributes {stable_mosaic.version = 11 : i64} {
  func.func @lr_kernel(%arg0: i32, %arg1: i32, %arg2: memref<4x128xi32, #tpu.memory_space<vmem>>, %arg3: memref<128x1xf32, #tpu.memory_space<vmem>>, %arg4: memref<4xi32, #tpu.memory_space<smem>>, %arg5: memref<4xi32, #tpu.memory_space<smem>>, %arg6: memref<1xf32, #tpu.memory_space<smem>>, %arg7: memref<1x128xf32, #tpu.memory_space<vmem>>) attributes {dimension_semantics = [#tpu.dimension_semantics<parallel>, #tpu.dimension_semantics<arbitrary>], iteration_bounds = array<i64: 1, 1>, scalar_prefetch = 0 : i64, scratch_operands = 0 : i64, tpu.core_type = #tpu.core_type<tc>, window_params = [{transform_indices = @transform_0, window_bounds = array<i64: 4, 128>}, {transform_indices = @transform_1, window_bounds = array<i64: 128, 1>}, {transform_indices = @transform_2, window_bounds = array<i64: 4>}, {transform_indices = @transform_3, window_bounds = array<i64: 4>}, {transform_indices = @transform_4, window_bounds = array<i64: 1>}, {transform_indices = @transform_5, window_bounds = array<i64: 1, 128>}]} {
    %c0_i32 = arith.constant 0 : i32
    %0 = arith.cmpi eq, %arg1, %c0_i32 : i32
    %1 = arith.extui %0 : i1 to i32
    %c0_i32_0 = arith.constant 0 : i32
    %2 = arith.cmpi ne, %1, %c0_i32_0 : i32
    scf.if %2 {
      %cst = arith.constant 0.000000e+00 : f32
      %40 = vector.broadcast %cst : f32 to vector<1x128xf32>
      %c0_14 = arith.constant 0 : index
      %c0_15 = arith.constant 0 : index
      %41 = vector.load %arg7[%c0_14, %c0_15] : memref<1x128xf32, #tpu.memory_space<vmem>>, vector<1x128xf32>
      tpu.vector_store %arg7[%c0_14, %c0_15], %40 {strides = array<i32>} : memref<1x128xf32, #tpu.memory_space<vmem>>, vector<1x128xf32>,
    } else {
    }
    %c128_i32 = arith.constant 128 : i32
    %3 = arith.muli %arg1, %c128_i32 : i32
    %c128_i32_1 = arith.constant 128 : i32
    %4 = arith.addi %3, %c128_i32_1 : i32
    %5 = tpu.iota {dimensions = array<i32: 0>} : vector<128x128xi32>
    %c0 = arith.constant 0 : index
    %c0_2 = arith.constant 0 : index
    %6 = vector.load %arg3[%c0, %c0_2] : memref<128x1xf32, #tpu.memory_space<vmem>>, vector<128x1xf32>
    %7 = vector.shape_cast %6 : vector<128x1xf32> to vector<128x1xf32>
    %8 = vector.broadcast %7 : vector<128x1xf32> to vector<128x128xf32>
    %c0_3 = arith.constant 0 : index
    %9 = memref.load %arg4[%c0_3] : memref<4xi32, #tpu.memory_space<smem>>
    %10 = arith.cmpi slt, %9, %4 : i32
    %c0_4 = arith.constant 0 : index
    %11 = memref.load %arg5[%c0_4] : memref<4xi32, #tpu.memory_space<smem>>
    %12 = arith.cmpi sgt, %11, %3 : i32
    %13 = arith.andi %10, %12 : i1
    %14 = arith.extui %13 : i1 to i32
    %c0_i32_5 = arith.constant 0 : i32
    %15 = arith.cmpi ne, %14, %c0_i32_5 : i32
    scf.if %15 {
      %c0_14 = arith.constant 0 : index
      %c0_15 = arith.constant 0 : index
      %40 = vector.load %arg2[%c0_14, %c0_15] : memref<4x128xi32, #tpu.memory_space<vmem>>, vector<1x128xi32>
      %41 = vector.broadcast %3 : i32 to vector<1x128xi32>
      %42 = arith.subi %40, %41 : vector<1x128xi32>
      %43 = vector.broadcast %42 : vector<1x128xi32> to vector<128x128xi32>
      %44 = arith.cmpi eq, %43, %5 : vector<128x128xi32>
      %cst = arith.constant 0.000000e+00 : f32
      %45 = vector.broadcast %cst : f32 to vector<128x128xf32>
      %46 = arith.select %44, %8, %45 : vector<128x128xi1>, vector<128x128xf32>
      %c0_16 = arith.constant 0 : index
      %c0_17 = arith.constant 0 : index
      %47 = vector.load %arg7[%c0_16, %c0_17] : memref<1x128xf32, #tpu.memory_space<vmem>>, vector<1x128xf32>
      %cst_18 = arith.constant dense<0.000000e+00> : vector<128xf32>
      %48 = vector.multi_reduction <add>, %46, %cst_18 [0] : vector<128x128xf32> to vector<128xf32>
      %49 = vector.shape_cast %48 : vector<128xf32> to vector<1x128xf32>
      %50 = arith.addf %47, %49 : vector<1x128xf32>
      %c0_19 = arith.constant 0 : index
      %c0_20 = arith.constant 0 : index
      %51 = vector.load %arg7[%c0_19, %c0_20] : memref<1x128xf32, #tpu.memory_space<vmem>>, vector<1x128xf32>
      tpu.vector_store %arg7[%c0_19, %c0_20], %50 {strides = array<i32>} : memref<1x128xf32, #tpu.memory_space<vmem>>, vector<1x128xf32>,
    } else {
    }
    %c1 = arith.constant 1 : index
    %16 = memref.load %arg4[%c1] : memref<4xi32, #tpu.memory_space<smem>>
    %17 = arith.cmpi slt, %16, %4 : i32
    %c1_6 = arith.constant 1 : index
    %18 = memref.load %arg5[%c1_6] : memref<4xi32, #tpu.memory_space<smem>>
    %19 = arith.cmpi sgt, %18, %3 : i32
    %20 = arith.andi %17, %19 : i1
    %21 = arith.extui %20 : i1 to i32
    %c0_i32_7 = arith.constant 0 : i32
    %22 = arith.cmpi ne, %21, %c0_i32_7 : i32
    scf.if %22 {
      %c1_14 = arith.constant 1 : index
      %c0_15 = arith.constant 0 : index
      %40 = vector.load %arg2[%c1_14, %c0_15] : memref<4x128xi32, #tpu.memory_space<vmem>>, vector<1x128xi32>
      %41 = vector.broadcast %3 : i32 to vector<1x128xi32>
      %42 = arith.subi %40, %41 : vector<1x128xi32>
      %43 = vector.broadcast %42 : vector<1x128xi32> to vector<128x128xi32>
      %44 = arith.cmpi eq, %43, %5 : vector<128x128xi32>
      %cst = arith.constant 0.000000e+00 : f32
      %45 = vector.broadcast %cst : f32 to vector<128x128xf32>
      %46 = arith.select %44, %8, %45 : vector<128x128xi1>, vector<128x128xf32>
      %c0_16 = arith.constant 0 : index
      %c0_17 = arith.constant 0 : index
      %47 = vector.load %arg7[%c0_16, %c0_17] : memref<1x128xf32, #tpu.memory_space<vmem>>, vector<1x128xf32>
      %cst_18 = arith.constant dense<0.000000e+00> : vector<128xf32>
      %48 = vector.multi_reduction <add>, %46, %cst_18 [0] : vector<128x128xf32> to vector<128xf32>
      %49 = vector.shape_cast %48 : vector<128xf32> to vector<1x128xf32>
      %50 = arith.addf %47, %49 : vector<1x128xf32>
      %c0_19 = arith.constant 0 : index
      %c0_20 = arith.constant 0 : index
      %51 = vector.load %arg7[%c0_19, %c0_20] : memref<1x128xf32, #tpu.memory_space<vmem>>, vector<1x128xf32>
      tpu.vector_store %arg7[%c0_19, %c0_20], %50 {strides = array<i32>} : memref<1x128xf32, #tpu.memory_space<vmem>>, vector<1x128xf32>,
    } else {
    }
    %c2 = arith.constant 2 : index
    %23 = memref.load %arg4[%c2] : memref<4xi32, #tpu.memory_space<smem>>
    %24 = arith.cmpi slt, %23, %4 : i32
    %c2_8 = arith.constant 2 : index
    %25 = memref.load %arg5[%c2_8] : memref<4xi32, #tpu.memory_space<smem>>
    %26 = arith.cmpi sgt, %25, %3 : i32
    %27 = arith.andi %24, %26 : i1
    %28 = arith.extui %27 : i1 to i32
    %c0_i32_9 = arith.constant 0 : i32
    %29 = arith.cmpi ne, %28, %c0_i32_9 : i32
    scf.if %29 {
      %c2_14 = arith.constant 2 : index
      %c0_15 = arith.constant 0 : index
      %40 = vector.load %arg2[%c2_14, %c0_15] : memref<4x128xi32, #tpu.memory_space<vmem>>, vector<1x128xi32>
      %41 = vector.broadcast %3 : i32 to vector<1x128xi32>
      %42 = arith.subi %40, %41 : vector<1x128xi32>
      %43 = vector.broadcast %42 : vector<1x128xi32> to vector<128x128xi32>
      %44 = arith.cmpi eq, %43, %5 : vector<128x128xi32>
      %cst = arith.constant 0.000000e+00 : f32
      %45 = vector.broadcast %cst : f32 to vector<128x128xf32>
      %46 = arith.select %44, %8, %45 : vector<128x128xi1>, vector<128x128xf32>
      %c0_16 = arith.constant 0 : index
      %c0_17 = arith.constant 0 : index
      %47 = vector.load %arg7[%c0_16, %c0_17] : memref<1x128xf32, #tpu.memory_space<vmem>>, vector<1x128xf32>
      %cst_18 = arith.constant dense<0.000000e+00> : vector<128xf32>
      %48 = vector.multi_reduction <add>, %46, %cst_18 [0] : vector<128x128xf32> to vector<128xf32>
      %49 = vector.shape_cast %48 : vector<128xf32> to vector<1x128xf32>
      %50 = arith.addf %47, %49 : vector<1x128xf32>
      %c0_19 = arith.constant 0 : index
      %c0_20 = arith.constant 0 : index
      %51 = vector.load %arg7[%c0_19, %c0_20] : memref<1x128xf32, #tpu.memory_space<vmem>>, vector<1x128xf32>
      tpu.vector_store %arg7[%c0_19, %c0_20], %50 {strides = array<i32>} : memref<1x128xf32, #tpu.memory_space<vmem>>, vector<1x128xf32>,
    } else {
    }
    %c3 = arith.constant 3 : index
    %30 = memref.load %arg4[%c3] : memref<4xi32, #tpu.memory_space<smem>>
    %31 = arith.cmpi slt, %30, %4 : i32
    %c3_10 = arith.constant 3 : index
    %32 = memref.load %arg5[%c3_10] : memref<4xi32, #tpu.memory_space<smem>>
    %33 = arith.cmpi sgt, %32, %3 : i32
    %34 = arith.andi %31, %33 : i1
    %35 = arith.extui %34 : i1 to i32
    %c0_i32_11 = arith.constant 0 : i32
    %36 = arith.cmpi ne, %35, %c0_i32_11 : i32
    scf.if %36 {
      %c3_14 = arith.constant 3 : index
      %c0_15 = arith.constant 0 : index
      %40 = vector.load %arg2[%c3_14, %c0_15] : memref<4x128xi32, #tpu.memory_space<vmem>>, vector<1x128xi32>
      %41 = vector.broadcast %3 : i32 to vector<1x128xi32>
      %42 = arith.subi %40, %41 : vector<1x128xi32>
      %43 = vector.broadcast %42 : vector<1x128xi32> to vector<128x128xi32>
      %44 = arith.cmpi eq, %43, %5 : vector<128x128xi32>
      %cst = arith.constant 0.000000e+00 : f32
      %45 = vector.broadcast %cst : f32 to vector<128x128xf32>
      %46 = arith.select %44, %8, %45 : vector<128x128xi1>, vector<128x128xf32>
      %c0_16 = arith.constant 0 : index
      %c0_17 = arith.constant 0 : index
      %47 = vector.load %arg7[%c0_16, %c0_17] : memref<1x128xf32, #tpu.memory_space<vmem>>, vector<1x128xf32>
      %cst_18 = arith.constant dense<0.000000e+00> : vector<128xf32>
      %48 = vector.multi_reduction <add>, %46, %cst_18 [0] : vector<128x128xf32> to vector<128xf32>
      %49 = vector.shape_cast %48 : vector<128xf32> to vector<1x128xf32>
      %50 = arith.addf %47, %49 : vector<1x128xf32>
      %c0_19 = arith.constant 0 : index
      %c0_20 = arith.constant 0 : index
      %51 = vector.load %arg7[%c0_19, %c0_20] : memref<1x128xf32, #tpu.memory_space<vmem>>, vector<1x128xf32>
      tpu.vector_store %arg7[%c0_19, %c0_20], %50 {strides = array<i32>} : memref<1x128xf32, #tpu.memory_space<vmem>>, vector<1x128xf32>,
    } else {
    }
    %c0_i32_12 = arith.constant 0 : i32
    %37 = arith.cmpi eq, %arg1, %c0_i32_12 : i32
    %38 = arith.extui %37 : i1 to i32
    %c0_i32_13 = arith.constant 0 : i32
    %39 = arith.cmpi ne, %38, %c0_i32_13 : i32
    scf.if %39 {
      %c0_14 = arith.constant 0 : index
      %c0_15 = arith.constant 0 : index
      %40 = vector.load %arg7[%c0_14, %c0_15] : memref<1x128xf32, #tpu.memory_space<vmem>>, vector<1x128xf32>
      %c0_16 = arith.constant 0 : index
      %41 = memref.load %arg6[%c0_16] : memref<1xf32, #tpu.memory_space<smem>>
      %42 = vector.broadcast %41 : f32 to vector<1x128xf32>
      %43 = arith.addf %40, %42 : vector<1x128xf32>
      %44 = arith.negf %43 : vector<1x128xf32>
      %45 = math.exp %44 : vector<1x128xf32>
      %cst = arith.constant 1.000000e+00 : f32
      %46 = vector.broadcast %cst : f32 to vector<1x128xf32>
      %47 = arith.addf %46, %45 : vector<1x128xf32>
      %48 = arith.divf %46, %47 : vector<1x128xf32>
      %c0_17 = arith.constant 0 : index
      %c0_18 = arith.constant 0 : index
      %49 = vector.load %arg7[%c0_17, %c0_18] : memref<1x128xf32, #tpu.memory_space<vmem>>, vector<1x128xf32>
      tpu.vector_store %arg7[%c0_17, %c0_18], %48 {strides = array<i32>} : memref<1x128xf32, #tpu.memory_space<vmem>>, vector<1x128xf32>,
    } else {
    }
    return
  }
  func.func @transform_0(%arg0: i32, %arg1: i32) -> (i32, i32) {
    %c0_i32 = arith.constant 0 : i32
    %c0_i32_0 = arith.constant 0 : i32
    return %c0_i32, %arg0 : i32, i32
  }
  func.func @transform_1(%arg0: i32, %arg1: i32) -> (i32, i32) {
    %c0_i32 = arith.constant 0 : i32
    %c0_i32_0 = arith.constant 0 : i32
    return %arg1, %c0_i32 : i32, i32
  }
  func.func @transform_2(%arg0: i32, %arg1: i32) -> i32 {
    %c0_i32 = arith.constant 0 : i32
    %c0_i32_0 = arith.constant 0 : i32
    return %c0_i32 : i32
  }
  func.func @transform_3(%arg0: i32, %arg1: i32) -> i32 {
    %c0_i32 = arith.constant 0 : i32
    %c0_i32_0 = arith.constant 0 : i32
    return %c0_i32 : i32
  }
  func.func @transform_4(%arg0: i32, %arg1: i32) -> i32 {
    %c0_i32 = arith.constant 0 : i32
    %c0_i32_0 = arith.constant 0 : i32
    return %c0_i32 : i32
  }
  func.func @transform_5(%arg0: i32, %arg1: i32) -> (i32, i32) {
    %c0_i32 = arith.constant 0 : i32
    %c0_i32_0 = arith.constant 0 : i32
    return %c0_i32, %arg0 : i32, i32
  }
}

</mosaic_0001>

<llo_original>
// kernel: tpu_custom_call.1
$region0: #{tpu_custom_call.1}
  #allocation0 [shape = 'u32[]', space=smem, size = 0x4, offset = 0x4, fixed_abs, tag = 'smem constant byte address 0x4 - core index']
  #allocation1 [shape = 'u32[144,128]{1,0:T(1,128)}', space=vmem, size = 0x12000, scoped, tag = 'internal scratch']
  #allocation2 [shape = 'f32[1]{0:T(128)S(6)}', space=smem, size = 0x200, scoped, tag = 'scoped memory for tpu_custom_call.1']
  %s0 = inlined_call_operand.vmem [shape: s32[4,128], index: 0, kind: input, shape index: {}]
  %s1 = inlined_call_operand.vmem [shape: f32[128,1], index: 1, kind: input, shape index: {}]
  %s2 = inlined_call_operand.vmem [shape: s32[4], index: 2, kind: input, shape index: {}]
  %s3 = inlined_call_operand.vmem [shape: s32[4], index: 3, kind: input, shape index: {}]
  %s4 = inlined_call_operand.<no memory space> [shape: f32[1], index: 4, kind: input, shape index: {}]
  %s5 = inlined_call_operand.hbm [shape: f32[1,128], index: 5, kind: output, shape index: {}]
  %s6 = sld [smem:[#allocation0]]
  $region62: #{tpu_custom_call.1} parent=0
    _
  %s8 = ssub.s32 1, %s6
  %s9 = scalar_select 0, %s8, %s6
  %10 = sst [smem:[#allocation2]] %s4
  $region1: #{tpu_custom_call.1} parent=0
    #allocation3 [shape = 'u8[512]{0}', space=smem, size = 0x200, scoped, tag = 'input window, operand 2, single buffered']
    #allocation4 [shape = 's32[1]{0}', space=sflag, size = 0x4, scoped, tag = 'scoped memory for tpu_custom_call.1']
    #allocation5 [shape = 's32[1]{0}', space=sflag, size = 0x4, scoped, tag = 'scoped memory for tpu_custom_call.1']
    #allocation6 [shape = 'u8[512]{0}', space=smem, size = 0x200, scoped, tag = 'input window, operand 3, single buffered']
    #allocation7 [shape = 's32[1]{0}', space=sflag, size = 0x4, scoped, tag = 'scoped memory for tpu_custom_call.1']
    #allocation8 [shape = 'u8[512]{0}', space=vmem, size = 0x400, scoped, tag = 'output window, operand 0, single buffered']
    %11 = vsyncpa [#allocation5], 0
    %12 = vsyncpa [#allocation7], 0
    %13 = vsyncpa [#allocation4], 0
    // Predicated region
    $region2: #{tpu_custom_call.1} parent=1 // pred_check
      _
    $region3: #{tpu_custom_call.1} parent=1 // pred_check_branch
      %15 = sbr.rel (0) target = $region5
    $region4: #{tpu_custom_call.1} parent=1 // pred_region
      _
    $region5: #{tpu_custom_call.1} parent=1 // pred_fallthru
      _
    // Predicated region
    $region6: #{tpu_custom_call.1} parent=1 // pred_check
      _
    $region7: #{tpu_custom_call.1} parent=1 // pred_check_branch
      %17 = sbr.rel (0) target = $region9
    $region8: #{tpu_custom_call.1} parent=1 // pred_region
      _
    $region9: #{tpu_custom_call.1} parent=1 // pred_fallthru
      _
    // Predicated region
    $region10: #{tpu_custom_call.1} parent=1 // pred_check
      _
    $region11: #{tpu_custom_call.1} parent=1 // pred_check_branch
      %19 = sbr.rel (0) target = $region13
    $region12: #{tpu_custom_call.1} parent=1 // pred_region
      %s21 = ssub.s32 16, 16
      %22 = vsyncadd [#allocation5], %s21
      %s24 = sshll.u32 %s2, 4
      %s25 = int_to_ptr.vmem [resolvable:$true] %s24
      %27 = dma.vmem_to_smem %s25, 16, [#allocation3], [#allocation5]
    $region13: #{tpu_custom_call.1} parent=1 // pred_fallthru
      _
    // Predicated region
    $region14: #{tpu_custom_call.1} parent=1 // pred_check
      _
    $region15: #{tpu_custom_call.1} parent=1 // pred_check_branch
      %29 = sbr.rel (0) target = $region17
    $region16: #{tpu_custom_call.1} parent=1 // pred_region
      %s31 = ssub.s32 16, 16
      %32 = vsyncadd [#allocation7], %s31
      %s34 = sshll.u32 %s3, 4
      %s35 = int_to_ptr.vmem [resolvable:$true] %s34
      %37 = dma.vmem_to_smem %s35, 16, [#allocation6], [#allocation7]
    $region17: #{tpu_custom_call.1} parent=1 // pred_fallthru
      _
    // Predicated region
    $region18: #{tpu_custom_call.1} parent=1 // pred_check
      _
    $region19: #{tpu_custom_call.1} parent=1 // pred_check_branch
      %39 = sbr.rel (0) target = $region21
    $region20: #{tpu_custom_call.1} parent=1 // pred_region
      _
    $region21: #{tpu_custom_call.1} parent=1 // pred_fallthru
      _
    // Predicated region
    $region22: #{tpu_custom_call.1} parent=1 // pred_check
      _
    $region23: #{tpu_custom_call.1} parent=1 // pred_check_branch
      %41 = sbr.rel (0) target = $region25
    $region24: #{tpu_custom_call.1} parent=1 // pred_region
      %42 = dma.done [#allocation5], 16
    $region25: #{tpu_custom_call.1} parent=1 // pred_fallthru
      _
    // Predicated region
    $region26: #{tpu_custom_call.1} parent=1 // pred_check
      _
    $region27: #{tpu_custom_call.1} parent=1 // pred_check_branch
      %44 = sbr.rel (0) target = $region29
    $region28: #{tpu_custom_call.1} parent=1 // pred_region
      %45 = dma.done [#allocation7], 16
    $region29: #{tpu_custom_call.1} parent=1 // pred_fallthru
      _
    %46 = sfence
    %p47 = scmp.eq.s32.totalorder 0, 0
    // Predicated region
    $region30: #{tpu_custom_call.1} parent=1 // pred_check
      %p48 = pneg %p47
    $region31: #{tpu_custom_call.1} parent=1 // pred_check_branch
      %50 = sbr.rel (%p48) target = $region33
    $region32: #{tpu_custom_call.1} parent=1 // pred_region
      %51 = vst [vmem:[#allocation8] sm:$0x1] 0.0
    $region33: #{tpu_custom_call.1} parent=1 // pred_fallthru
      _
    %s52 = smul.u32 0, 128
    %s53 = sadd.s32 %s52, 128
    %v54 = vlaneseq
    %v55 = vshrl.u32 %v54, 7
    %v56 = vadd.s32 %v55, 8
    %v57 = vadd.s32 %v55, 16
    %v58 = vadd.s32 %v55, 24
    %v59 = vadd.s32 %v55, 32
    %v60 = vadd.s32 %v55, 40
    %v61 = vadd.s32 %v55, 48
    %v62 = vadd.s32 %v55, 56
    %v63 = vadd.s32 %v55, 64
    %v64 = vadd.s32 %v55, 72
    %v65 = vadd.s32 %v55, 80
    %v66 = vadd.s32 %v55, 88
    %v67 = vadd.s32 %v55, 96
    %v68 = vadd.s32 %v55, 104
    %v69 = vadd.s32 %v55, 112
    %v70 = vadd.s32 %v55, 120
    %v71 = vld [vmem:[%s1] sm:$0xff]
    %v72 = vld [vmem:[%s1 + $0x8] sm:$0xff]
    %v73 = vld [vmem:[%s1 + $0x10] sm:$0xff]
    %v74 = vld [vmem:[%s1 + $0x18] sm:$0xff]
    %v75 = vld [vmem:[%s1 + $0x20] sm:$0xff]
    %v76 = vld [vmem:[%s1 + $0x28] sm:$0xff]
    %v77 = vld [vmem:[%s1 + $0x30] sm:$0xff]
    %v78 = vld [vmem:[%s1 + $0x38] sm:$0xff]
    %v79 = vld [vmem:[%s1 + $0x40] sm:$0xff]
    %v80 = vld [vmem:[%s1 + $0x48] sm:$0xff]
    %v81 = vld [vmem:[%s1 + $0x50] sm:$0xff]
    %v82 = vld [vmem:[%s1 + $0x58] sm:$0xff]
    %v83 = vld [vmem:[%s1 + $0x60] sm:$0xff]
    %v84 = vld [vmem:[%s1 + $0x68] sm:$0xff]
    %v85 = vld [vmem:[%s1 + $0x70] sm:$0xff]
    %v86 = vld [vmem:[%s1 + $0x78] sm:$0xff]
    %88 = vset.pattern.permute.xlu0 0
    %89 = vperm.xlu0 %88, %v71
    %v90 = vpop.permute.xlu0 %89
    %93 = vset.pattern.permute.xlu0 0
    %94 = vperm.xlu0 %93, %v72
    %v95 = vpop.permute.xlu0 %94
    %98 = vset.pattern.permute.xlu0 0
    %99 = vperm.xlu0 %98, %v73
    %v100 = vpop.permute.xlu0 %99
    %103 = vset.pattern.permute.xlu0 0
    %104 = vperm.xlu0 %103, %v74
    %v105 = vpop.permute.xlu0 %104
    %108 = vset.pattern.permute.xlu0 0
    %109 = vperm.xlu0 %108, %v75
    %v110 = vpop.permute.xlu0 %109
    %113 = vset.pattern.permute.xlu0 0
    %114 = vperm.xlu0 %113, %v76
    %v115 = vpop.permute.xlu0 %114
    %118 = vset.pattern.permute.xlu0 0
    %119 = vperm.xlu0 %118, %v77
    %v120 = vpop.permute.xlu0 %119
    %123 = vset.pattern.permute.xlu0 0
    %124 = vperm.xlu0 %123, %v78
    %v125 = vpop.permute.xlu0 %124
    %128 = vset.pattern.permute.xlu0 0
    %129 = vperm.xlu0 %128, %v79
    %v130 = vpop.permute.xlu0 %129
    %133 = vset.pattern.permute.xlu0 0
    %134 = vperm.xlu0 %133, %v80
    %v135 = vpop.permute.xlu0 %134
    %138 = vset.pattern.permute.xlu0 0
    %139 = vperm.xlu0 %138, %v81
    %v140 = vpop.permute.xlu0 %139
    %143 = vset.pattern.permute.xlu0 0
    %144 = vperm.xlu0 %143, %v82
    %v145 = vpop.permute.xlu0 %144
    %148 = vset.pattern.permute.xlu0 0
    %149 = vperm.xlu0 %148, %v83
    %v150 = vpop.permute.xlu0 %149
    %153 = vset.pattern.permute.xlu0 0
    %154 = vperm.xlu0 %153, %v84
    %v155 = vpop.permute.xlu0 %154
    %158 = vset.pattern.permute.xlu0 0
    %159 = vperm.xlu0 %158, %v85
    %v160 = vpop.permute.xlu0 %159
    %163 = vset.pattern.permute.xlu0 0
    %164 = vperm.xlu0 %163, %v86
    %v165 = vpop.permute.xlu0 %164
    %s167 = sld [smem:[#allocation3]]
    %p168 = scmp.lt.s32.totalorder %s167, %s53
    %s169 = sld [smem:[#allocation6]]
    %p170 = scmp.gt.s32.totalorder %s169, %s52
    %p171 = pnand %p168, %p170
    %p172 = pneg %p171
    // Predicated region
    $region34: #{tpu_custom_call.1} parent=1 // pred_check
      _
    $region35: #{tpu_custom_call.1} parent=1 // pred_check_branch
      %174 = sbr.rel (%p171) target = $region37
    $region36: #{tpu_custom_call.1} parent=1 // pred_region
      %v175 = vld [vmem:[%s0] sm:$0x1]
      %v176 = vstv %s52
      %v177 = vsub.s32 %v175, %v176
      %v178 = vlaneseq
      %v179 = vshrl.u32 %v178, 7
      %v180 = vsub.s32 0, %v179
      %v181 = vrot.slane %v177, %v180
      %vm182 = vcmp.eq.s32.totalorder %v181, %v55
      %vm183 = vcmp.eq.s32.totalorder %v181, %v56
      %vm184 = vcmp.eq.s32.totalorder %v181, %v57
      %vm185 = vcmp.eq.s32.totalorder %v181, %v58
      %vm186 = vcmp.eq.s32.totalorder %v181, %v59
      %vm187 = vcmp.eq.s32.totalorder %v181, %v60
      %vm188 = vcmp.eq.s32.totalorder %v181, %v61
      %vm189 = vcmp.eq.s32.totalorder %v181, %v62
      %vm190 = vcmp.eq.s32.totalorder %v181, %v63
      %vm191 = vcmp.eq.s32.totalorder %v181, %v64
      %vm192 = vcmp.eq.s32.totalorder %v181, %v65
      %vm193 = vcmp.eq.s32.totalorder %v181, %v66
      %vm194 = vcmp.eq.s32.totalorder %v181, %v67
      %vm195 = vcmp.eq.s32.totalorder %v181, %v68
      %vm196 = vcmp.eq.s32.totalorder %v181, %v69
      %vm197 = vcmp.eq.s32.totalorder %v181, %v70
      %v198 = vsel %vm182, %v90, 0.0
      %v199 = vsel %vm183, %v95, 0.0
      %v200 = vsel %vm184, %v100, 0.0
      %v201 = vsel %vm185, %v105, 0.0
      %v202 = vsel %vm186, %v110, 0.0
      %v203 = vsel %vm187, %v115, 0.0
      %v204 = vsel %vm188, %v120, 0.0
      %v205 = vsel %vm189, %v125, 0.0
      %v206 = vsel %vm190, %v130, 0.0
      %v207 = vsel %vm191, %v135, 0.0
      %v208 = vsel %vm192, %v140, 0.0
      %v209 = vsel %vm193, %v145, 0.0
      %v210 = vsel %vm194, %v150, 0.0
      %v211 = vsel %vm195, %v155, 0.0
      %v212 = vsel %vm196, %v160, 0.0
      %v213 = vsel %vm197, %v165, 0.0
      %v214 = vld [vmem:[#allocation8] sm:$0x1]
      %v215 = vadd.f32 %v198, %v199
      %v216 = vadd.f32 %v215, %v200
      %v217 = vadd.f32 %v216, %v201
      %v218 = vadd.f32 %v217, %v202
      %v219 = vadd.f32 %v218, %v203
      %v220 = vadd.f32 %v219, %v204
      %v221 = vadd.f32 %v220, %v205
      %v222 = vadd.f32 %v221, %v206
      %v223 = vadd.f32 %v222, %v207
      %v224 = vadd.f32 %v223, %v208
      %v225 = vadd.f32 %v224, %v209
      %v226 = vadd.f32 %v225, %v210
      %v227 = vadd.f32 %v226, %v211
      %v228 = vadd.f32 %v227, %v212
      %v229 = vadd.f32 %v228, %v213
      %v230 = vrot.slane %v229, 4
      %v231 = vadd.f32 %v229, %v230
      %v232 = vrot.slane %v231, 2
      %v233 = vadd.f32 %v231, %v232
      %v234 = vrot.slane %v233, 1
      %v235 = vadd.f32 %v233, %v234
      %v236 = vadd.f32 %v214, %v235
      %237 = vst [vmem:[#allocation8] sm:$0x1] %v236
    $region37: #{tpu_custom_call.1} parent=1 // pred_fallthru
      _
    %s238 = sld [smem:[#allocation3 + $0x1]]
    %p239 = scmp.lt.s32.totalorder %s238, %s53
    %s240 = sld [smem:[#allocation6 + $0x1]]
    %p241 = scmp.gt.s32.totalorder %s240, %s52
    %p242 = pnand %p239, %p241
    %p243 = pneg %p242
    // Predicated region
    $region38: #{tpu_custom_call.1} parent=1 // pred_check
      _
    $region39: #{tpu_custom_call.1} parent=1 // pred_check_branch
      %245 = sbr.rel (%p242) target = $region41
    $region40: #{tpu_custom_call.1} parent=1 // pred_region
      %v246 = vld [vmem:[%s0 + $0x1] sm:$0x1]
      %v247 = vstv %s52
      %v248 = vsub.s32 %v246, %v247
      %v249 = vlaneseq
      %v250 = vshrl.u32 %v249, 7
      %v251 = vsub.s32 0, %v250
      %v252 = vrot.slane %v248, %v251
      %vm253 = vcmp.eq.s32.totalorder %v252, %v55
      %vm254 = vcmp.eq.s32.totalorder %v252, %v56
      %vm255 = vcmp.eq.s32.totalorder %v252, %v57
      %vm256 = vcmp.eq.s32.totalorder %v252, %v58
      %vm257 = vcmp.eq.s32.totalorder %v252, %v59
      %vm258 = vcmp.eq.s32.totalorder %v252, %v60
      %vm259 = vcmp.eq.s32.totalorder %v252, %v61
      %vm260 = vcmp.eq.s32.totalorder %v252, %v62
      %vm261 = vcmp.eq.s32.totalorder %v252, %v63
      %vm262 = vcmp.eq.s32.totalorder %v252, %v64
      %vm263 = vcmp.eq.s32.totalorder %v252, %v65
      %vm264 = vcmp.eq.s32.totalorder %v252, %v66
      %vm265 = vcmp.eq.s32.totalorder %v252, %v67
      %vm266 = vcmp.eq.s32.totalorder %v252, %v68
      %vm267 = vcmp.eq.s32.totalorder %v252, %v69
      %vm268 = vcmp.eq.s32.totalorder %v252, %v70
      %v269 = vsel %vm253, %v90, 0.0
      %v270 = vsel %vm254, %v95, 0.0
      %v271 = vsel %vm255, %v100, 0.0
      %v272 = vsel %vm256, %v105, 0.0
      %v273 = vsel %vm257, %v110, 0.0
      %v274 = vsel %vm258, %v115, 0.0
      %v275 = vsel %vm259, %v120, 0.0
      %v276 = vsel %vm260, %v125, 0.0
      %v277 = vsel %vm261, %v130, 0.0
      %v278 = vsel %vm262, %v135, 0.0
      %v279 = vsel %vm263, %v140, 0.0
      %v280 = vsel %vm264, %v145, 0.0
      %v281 = vsel %vm265, %v150, 0.0
      %v282 = vsel %vm266, %v155, 0.0
      %v283 = vsel %vm267, %v160, 0.0
      %v284 = vsel %vm268, %v165, 0.0
      %v285 = vld [vmem:[#allocation8] sm:$0x1]
      %v286 = vadd.f32 %v269, %v270
      %v287 = vadd.f32 %v286, %v271
      %v288 = vadd.f32 %v287, %v272
      %v289 = vadd.f32 %v288, %v273
      %v290 = vadd.f32 %v289, %v274
      %v291 = vadd.f32 %v290, %v275
      %v292 = vadd.f32 %v291, %v276
      %v293 = vadd.f32 %v292, %v277
      %v294 = vadd.f32 %v293, %v278
      %v295 = vadd.f32 %v294, %v279
      %v296 = vadd.f32 %v295, %v280
      %v297 = vadd.f32 %v296, %v281
      %v298 = vadd.f32 %v297, %v282
      %v299 = vadd.f32 %v298, %v283
      %v300 = vadd.f32 %v299, %v284
      %v301 = vrot.slane %v300, 4
      %v302 = vadd.f32 %v300, %v301
      %v303 = vrot.slane %v302, 2
      %v304 = vadd.f32 %v302, %v303
      %v305 = vrot.slane %v304, 1
      %v306 = vadd.f32 %v304, %v305
      %v307 = vadd.f32 %v285, %v306
      %308 = vst [vmem:[#allocation8] sm:$0x1] %v307
    $region41: #{tpu_custom_call.1} parent=1 // pred_fallthru
      _
    %s309 = sld [smem:[#allocation3 + $0x2]]
    %p310 = scmp.lt.s32.totalorder %s309, %s53
    %s311 = sld [smem:[#allocation6 + $0x2]]
    %p312 = scmp.gt.s32.totalorder %s311, %s52
    %p313 = pnand %p310, %p312
    %p314 = pneg %p313
    // Predicated region
    $region42: #{tpu_custom_call.1} parent=1 // pred_check
      _
    $region43: #{tpu_custom_call.1} parent=1 // pred_check_branch
      %316 = sbr.rel (%p313) target = $region45
    $region44: #{tpu_custom_call.1} parent=1 // pred_region
      %v317 = vld [vmem:[%s0 + $0x2] sm:$0x1]
      %v318 = vstv %s52
      %v319 = vsub.s32 %v317, %v318
      %v320 = vlaneseq
      %v321 = vshrl.u32 %v320, 7
      %v322 = vsub.s32 0, %v321
      %v323 = vrot.slane %v319, %v322
      %vm324 = vcmp.eq.s32.totalorder %v323, %v55
      %vm325 = vcmp.eq.s32.totalorder %v323, %v56
      %vm326 = vcmp.eq.s32.totalorder %v323, %v57
      %vm327 = vcmp.eq.s32.totalorder %v323, %v58
      %vm328 = vcmp.eq.s32.totalorder %v323, %v59
      %vm329 = vcmp.eq.s32.totalorder %v323, %v60
      %vm330 = vcmp.eq.s32.totalorder %v323, %v61
      %vm331 = vcmp.eq.s32.totalorder %v323, %v62
      %vm332 = vcmp.eq.s32.totalorder %v323, %v63
      %vm333 = vcmp.eq.s32.totalorder %v323, %v64
      %vm334 = vcmp.eq.s32.totalorder %v323, %v65
      %vm335 = vcmp.eq.s32.totalorder %v323, %v66
      %vm336 = vcmp.eq.s32.totalorder %v323, %v67
      %vm337 = vcmp.eq.s32.totalorder %v323, %v68
      %vm338 = vcmp.eq.s32.totalorder %v323, %v69
      %vm339 = vcmp.eq.s32.totalorder %v323, %v70
      %v340 = vsel %vm324, %v90, 0.0
      %v341 = vsel %vm325, %v95, 0.0
      %v342 = vsel %vm326, %v100, 0.0
      %v343 = vsel %vm327, %v105, 0.0
      %v344 = vsel %vm328, %v110, 0.0
      %v345 = vsel %vm329, %v115, 0.0
      %v346 = vsel %vm330, %v120, 0.0
      %v347 = vsel %vm331, %v125, 0.0
      %v348 = vsel %vm332, %v130, 0.0
      %v349 = vsel %vm333, %v135, 0.0
      %v350 = vsel %vm334, %v140, 0.0
      %v351 = vsel %vm335, %v145, 0.0
      %v352 = vsel %vm336, %v150, 0.0
      %v353 = vsel %vm337, %v155, 0.0
      %v354 = vsel %vm338, %v160, 0.0
      %v355 = vsel %vm339, %v165, 0.0
      %v356 = vld [vmem:[#allocation8] sm:$0x1]
      %v357 = vadd.f32 %v340, %v341
      %v358 = vadd.f32 %v357, %v342
      %v359 = vadd.f32 %v358, %v343
      %v360 = vadd.f32 %v359, %v344
      %v361 = vadd.f32 %v360, %v345
      %v362 = vadd.f32 %v361, %v346
      %v363 = vadd.f32 %v362, %v347
      %v364 = vadd.f32 %v363, %v348
      %v365 = vadd.f32 %v364, %v349
      %v366 = vadd.f32 %v365, %v350
      %v367 = vadd.f32 %v366, %v351
      %v368 = vadd.f32 %v367, %v352
      %v369 = vadd.f32 %v368, %v353
      %v370 = vadd.f32 %v369, %v354
      %v371 = vadd.f32 %v370, %v355
      %v372 = vrot.slane %v371, 4
      %v373 = vadd.f32 %v371, %v372
      %v374 = vrot.slane %v373, 2
      %v375 = vadd.f32 %v373, %v374
      %v376 = vrot.slane %v375, 1
      %v377 = vadd.f32 %v375, %v376
      %v378 = vadd.f32 %v356, %v377
      %379 = vst [vmem:[#allocation8] sm:$0x1] %v378
    $region45: #{tpu_custom_call.1} parent=1 // pred_fallthru
      _
    %s380 = sld [smem:[#allocation3 + $0x3]]
    %p381 = scmp.lt.s32.totalorder %s380, %s53
    %s382 = sld [smem:[#allocation6 + $0x3]]
    %p383 = scmp.gt.s32.totalorder %s382, %s52
    %p384 = pnand %p381, %p383
    %p385 = pneg %p384
    // Predicated region
    $region46: #{tpu_custom_call.1} parent=1 // pred_check
      _
    $region47: #{tpu_custom_call.1} parent=1 // pred_check_branch
      %387 = sbr.rel (%p384) target = $region49
    $region48: #{tpu_custom_call.1} parent=1 // pred_region
      %v388 = vld [vmem:[%s0 + $0x3] sm:$0x1]
      %v389 = vstv %s52
      %v390 = vsub.s32 %v388, %v389
      %v391 = vlaneseq
      %v392 = vshrl.u32 %v391, 7
      %v393 = vsub.s32 0, %v392
      %v394 = vrot.slane %v390, %v393
      %vm395 = vcmp.eq.s32.totalorder %v394, %v55
      %vm396 = vcmp.eq.s32.totalorder %v394, %v56
      %vm397 = vcmp.eq.s32.totalorder %v394, %v57
      %vm398 = vcmp.eq.s32.totalorder %v394, %v58
      %vm399 = vcmp.eq.s32.totalorder %v394, %v59
      %vm400 = vcmp.eq.s32.totalorder %v394, %v60
      %vm401 = vcmp.eq.s32.totalorder %v394, %v61
      %vm402 = vcmp.eq.s32.totalorder %v394, %v62
      %vm403 = vcmp.eq.s32.totalorder %v394, %v63
      %vm404 = vcmp.eq.s32.totalorder %v394, %v64
      %vm405 = vcmp.eq.s32.totalorder %v394, %v65
      %vm406 = vcmp.eq.s32.totalorder %v394, %v66
      %vm407 = vcmp.eq.s32.totalorder %v394, %v67
      %vm408 = vcmp.eq.s32.totalorder %v394, %v68
      %vm409 = vcmp.eq.s32.totalorder %v394, %v69
      %vm410 = vcmp.eq.s32.totalorder %v394, %v70
      %v411 = vsel %vm395, %v90, 0.0
      %v412 = vsel %vm396, %v95, 0.0
      %v413 = vsel %vm397, %v100, 0.0
      %v414 = vsel %vm398, %v105, 0.0
      %v415 = vsel %vm399, %v110, 0.0
      %v416 = vsel %vm400, %v115, 0.0
      %v417 = vsel %vm401, %v120, 0.0
      %v418 = vsel %vm402, %v125, 0.0
      %v419 = vsel %vm403, %v130, 0.0
      %v420 = vsel %vm404, %v135, 0.0
      %v421 = vsel %vm405, %v140, 0.0
      %v422 = vsel %vm406, %v145, 0.0
      %v423 = vsel %vm407, %v150, 0.0
      %v424 = vsel %vm408, %v155, 0.0
      %v425 = vsel %vm409, %v160, 0.0
      %v426 = vsel %vm410, %v165, 0.0
      %v427 = vld [vmem:[#allocation8] sm:$0x1]
      %v428 = vadd.f32 %v411, %v412
      %v429 = vadd.f32 %v428, %v413
      %v430 = vadd.f32 %v429, %v414
      %v431 = vadd.f32 %v430, %v415
      %v432 = vadd.f32 %v431, %v416
      %v433 = vadd.f32 %v432, %v417
      %v434 = vadd.f32 %v433, %v418
      %v435 = vadd.f32 %v434, %v419
      %v436 = vadd.f32 %v435, %v420
      %v437 = vadd.f32 %v436, %v421
      %v438 = vadd.f32 %v437, %v422
      %v439 = vadd.f32 %v438, %v423
      %v440 = vadd.f32 %v439, %v424
      %v441 = vadd.f32 %v440, %v425
      %v442 = vadd.f32 %v441, %v426
      %v443 = vrot.slane %v442, 4
      %v444 = vadd.f32 %v442, %v443
      %v445 = vrot.slane %v444, 2
      %v446 = vadd.f32 %v444, %v445
      %v447 = vrot.slane %v446, 1
      %v448 = vadd.f32 %v446, %v447
      %v449 = vadd.f32 %v427, %v448
      %450 = vst [vmem:[#allocation8] sm:$0x1] %v449
    $region49: #{tpu_custom_call.1} parent=1 // pred_fallthru
      _
    // Predicated region
    $region50: #{tpu_custom_call.1} parent=1 // pred_check
      %p451 = pneg %p47
    $region51: #{tpu_custom_call.1} parent=1 // pred_check_branch
      %453 = sbr.rel (%p451) target = $region53
    $region52: #{tpu_custom_call.1} parent=1 // pred_region
      %v454 = vld [vmem:[#allocation8] sm:$0x1]
      %s455 = sld [smem:[#allocation2]]
      %v456 = vstv %s455
      %v457 = vadd.f32 %v454, %v456
      %v458 = vxor.u32 %v457, 2147483648
      %v459 = vmul.f32 %v458, 1.442695
      %v460 = vpow.pop %v459
      %v461 = vadd.f32 %v460, 1.0
      %v462 = vrcp.pop %v461
      %v463 = vmul.f32 1.0, %v462
      %464 = vst [vmem:[#allocation8] sm:$0x1] %v463
    $region53: #{tpu_custom_call.1} parent=1 // pred_fallthru
      _
    // Predicated region
    $region54: #{tpu_custom_call.1} parent=1 // pred_check
      _
    $region55: #{tpu_custom_call.1} parent=1 // pred_check_branch
      %466 = sbr.rel (0) target = $region57
    $region56: #{tpu_custom_call.1} parent=1 // pred_region
      %s468 = ssub.s32 16, 16
      %469 = vsyncadd [#allocation4], %s468
      %s471 = sshll.u32 [#allocation8], 4
      %s472 = int_to_ptr.vmem [resolvable:$true] %s471
      %474 = dma.vmem_to_hbm [thread:$0]  %s472, 16, %s5, [#allocation4]
    $region57: #{tpu_custom_call.1} parent=1 // pred_fallthru
      _
    // Predicated region
    $region58: #{tpu_custom_call.1} parent=1 // pred_check
      _
    $region59: #{tpu_custom_call.1} parent=1 // pred_check_branch
      %476 = sbr.rel (0) target = $region61
    $region60: #{tpu_custom_call.1} parent=1 // pred_region
      %477 = dma.done [#allocation4], 16
    $region61: #{tpu_custom_call.1} parent=1 // pred_fallthru
      _
    %478 = vsyncpa [#allocation4], 1
    %479 = vsyncpa [#allocation5], 1
    %480 = vsyncpa [#allocation7], 1

</llo_original>
